<compile_context>
chip_gen: v5e
topology: v5e:2x2
jax: 0.10.0
libtpu: 0.0.40
codegen_flags: <defaults>
</compile_context>

<pallas_src>
import functools

import jax
import jax.numpy as jnp
from jax.experimental import pallas as pl
from jax.experimental.pallas import tpu as pltpu


def _round_up(x, m):
    return ((x + m - 1) // m) * m


def _choose_tile(n, max_tile=8192):
    """Pick a batch tile: multiple of 128, <= max_tile, and (when possible)
    giving at least 2 parallel grid steps so v7x megacore can use both TCs."""
    n128 = max(_round_up(n, 128), 128)
    if n128 <= 128:
        return 128
    half = _round_up((n128 + 1) // 2, 128)
    return min(max_tile, half)


def _mlp_kernel(meta, x_ref, p_ref, out_ref):
    """meta: tuple of (row_offset, fan_in_pad, fan_out_pad) per layer (static).

    x_ref:   (in_rows, tile_n)  activations, batch on lanes.
    p_ref:   (R_total, W_slab)  packed params; per layer the row block holds
             W^T in cols [0:fan_in_pad] and the bias in col [fan_in_pad].
    out_ref: (out_rows, tile_n).
    """
    n_layers = len(meta)
    h = x_ref[...]
    for i, (r0, fi_p, fo_p) in enumerate(meta):
        w = p_ref[r0:r0 + fo_p, 0:fi_p]            # static slice -> (fo_p, fi_p)
        b = p_ref[r0:r0 + fo_p, fi_p:fi_p + 1]     # (fo_p, 1), broadcast on lanes
        h = jnp.dot(w, h, preferred_element_type=jnp.float32) + b
        if i < n_layers - 1:                       # Tanh between hidden layers only
            h = jnp.tanh(h)
    out_ref[...] = h.astype(out_ref.dtype)


def prepare_params(weights, biases):
    """Pack + transpose + pad all parameters once (outside the hot path).

    weights[i] is (fan_in, fan_out) (reference forward is h @ W + b).
    Returns (slab, meta):
      slab: (sum fan_out_pad, max fan_in_pad + 1) f32, each layer's row block
            holds W^T in the leading fan_in_pad columns and b in the next one.
      meta: tuple of (row_offset, fan_in_pad, fan_out_pad) per layer.
    """
    width = max(_round_up(w.shape[0], 8) for w in weights) + 1
    blocks, meta, r0 = [], [], 0
    for w, b in zip(weights, biases):
        fi, fo = w.shape
        fi_p, fo_p = _round_up(fi, 8), _round_up(fo, 8)
        blk = jnp.zeros((fo_p, width), jnp.float32)
        blk = blk.at[:fo, :fi].set(jnp.asarray(w, jnp.float32).T)
        blk = blk.at[:fo, fi_p].set(jnp.asarray(b, jnp.float32))
        blocks.append(blk)
        meta.append((r0, fi_p, fo_p))
        r0 += fo_p
    slab = jnp.concatenate(blocks, axis=0)
    return slab, tuple(meta)


def pinn_forward(x, y, slab, meta, *, tile_n=None, max_tile=8192):
    """x, y: (N, 1) float32.  slab, meta: output of prepare_params.

    Returns (u, v, p), each (N, 1).
    """
    n = x.shape[0]
    in_rows = meta[0][1]     # padded fan_in of first layer (8)
    out_rows = meta[-1][2]   # padded fan_out of last layer (8)

    if tile_n is None:
        tile_n = _choose_tile(n, max_tile)
    if tile_n < 128 or tile_n % 128 != 0:
        raise ValueError(f"tile_n must be a multiple of 128 (got {tile_n})")

    n_pad = _round_up(n, tile_n)

    # Transposed input (in_rows, n_pad): row 0 = x, row 1 = y, rest zeros.
    # Single concat + single pad (no zeros-array + dynamic-update-slices).
    xy = jnp.concatenate([x, y], axis=1).astype(jnp.float32).T      # (2, n)
    xt = jnp.pad(xy, ((0, in_rows - 2), (0, n_pad - n)))            # (in_rows, n_pad)

    grid = (n_pad // tile_n,)

    out_p = pl.pallas_call(
        functools.partial(_mlp_kernel, meta),
        out_shape=jax.ShapeDtypeStruct((out_rows, n_pad), jnp.float32),
        grid_spec=pltpu.PrefetchScalarGridSpec(
            num_scalar_prefetch=0,
            grid=grid,
            in_specs=[
                pl.BlockSpec((in_rows, tile_n), lambda i: (0, i)),
                pl.BlockSpec(slab.shape, lambda i: (0, 0)),   # one packed slab
            ],
            out_specs=pl.BlockSpec((out_rows, tile_n), lambda i: (0, i)),
        ),
        compiler_params=pltpu.CompilerParams(
            dimension_semantics=("parallel",),
            vmem_limit_bytes=32 * 1024 * 1024),
    )(xt, slab)

    # Single slice of the padded output, then cheap splits of the tiny result.
    uvp = out_p[:3, :n].T                 # (n, 3)
    u = uvp[:, 0:1]
    v = uvp[:, 1:2]
    p = uvp[:, 2:3]
    return u, v, p


def _init_params(layers, key):
    """Deterministic PyTorch-Linear-style init: U(-1/sqrt(fan_in), 1/sqrt(fan_in))."""
    weights, biases = [], []
    for i in range(len(layers) - 1):
        fan_in, fan_out = layers[i], layers[i + 1]
        key, kw, kb = jax.random.split(key, 3)
        bound = 1.0 / jnp.sqrt(fan_in)
        # Stored (fan_in, fan_out) so the reference forward is h @ W + b.
        w = jax.random.uniform(kw, (fan_in, fan_out), jnp.float32, -bound, bound)
        b = jax.random.uniform(kb, (fan_out,), jnp.float32, -bound, bound)
        weights.append(w)
        biases.append(b)
    return weights, biases


def _reference_forward(x, y, weights, biases):
    h = jnp.concatenate([x, y], axis=1)
    n_layers = len(weights)
    for i, (w, b) in enumerate(zip(weights, biases)):
        h = h @ w + b
        if i < n_layers - 1:
            h = jnp.tanh(h)
    return h[:, 0:1], h[:, 1:2], h[:, 2:3]


# TODO(synk): compute_residuals relies on torch.autograd higher-order grads; the
# JAX equivalent is jax.grad/jvp composed around pinn_forward, not a separate kernel.

if __name__ == "__main__":
    layers = [2, 32, 32, 3]   # in=(x,y)=2, two hidden layers of 32, out=(u,v,p)=3
    nu = 0.01                 # unused in forward()
    key = jax.random.PRNGKey(0)
    weights, biases = _init_params(layers, key)

    # One-time parameter packing/padding (hoisted out of the per-call hot path).
    slab, meta = prepare_params(weights, biases)

    kx, ky = jax.random.split(jax.random.PRNGKey(0))
    N = 256
    x = jax.random.normal(kx, (N, 1), jnp.float32)
    y = jax.random.normal(ky, (N, 1), jnp.float32)

    # Auto tile selection: for this small N it picks tile_n=128 -> 2 parallel
    # grid steps (both v7x TensorCores usable); at production N it grows toward
    # the 8192 cap so per-step fixed overhead is amortized.
    forward = jax.jit(functools.partial(pinn_forward, meta=meta))
    u, v, p = forward(x, y, slab)
    jax.block_until_ready((u, v, p))

    u_ref, v_ref, p_ref = _reference_forward(x, y, weights, biases)
    assert u.shape == (N, 1) and v.shape == (N, 1) and p.shape == (N, 1)
    assert jnp.allclose(u, u_ref, atol=1e-5)
    assert jnp.allclose(v, v_ref, atol=1e-5)
    assert jnp.allclose(p, p_ref, atol=1e-5)

    print("KERNEL_OK")
</pallas_src>

<mosaic_0001>
module attributes {stable_mosaic.version = 11 : i64} {
  func.func @_mlp_kernel(%arg0: i32, %arg1: memref<8x128xf32, #tpu.memory_space<vmem>>, %arg2: memref<72x33xf32, #tpu.memory_space<vmem>>, %arg3: memref<8x128xf32, #tpu.memory_space<vmem>>) attributes {dimension_semantics = [#tpu.dimension_semantics<parallel>], iteration_bounds = array<i64: 2>, scalar_prefetch = 0 : i64, scratch_operands = 0 : i64, tpu.core_type = #tpu.core_type<tc>, window_params = [{transform_indices = @transform_0, window_bounds = array<i64: 8, 128>}, {pipeline_mode = #tpu.pipeline_mode<synchronous>, transform_indices = @transform_1, window_bounds = array<i64: 72, 33>}, {transform_indices = @transform_2, window_bounds = array<i64: 8, 128>}]} {
    %c0 = arith.constant 0 : index
    %c0_0 = arith.constant 0 : index
    %0 = vector.load %arg1[%c0, %c0_0] : memref<8x128xf32, #tpu.memory_space<vmem>>, vector<8x128xf32>
    %c0_1 = arith.constant 0 : index
    %c0_2 = arith.constant 0 : index
    %1 = vector.load %arg2[%c0_1, %c0_2] : memref<72x33xf32, #tpu.memory_space<vmem>>, vector<32x8xf32>
    %c0_3 = arith.constant 0 : index
    %c8 = arith.constant 8 : index
    %2 = vector.load %arg2[%c0_3, %c8] : memref<72x33xf32, #tpu.memory_space<vmem>>, vector<32x1xf32>
    %cst = arith.constant dense<0.000000e+00> : vector<32x128xf32>
    %3 = tpu.matmul %1, %0, %cst {dimension_numbers = #tpu.dot_dimension_numbers<[1], [0], [0], [1], [0, 0, 1, 1], [], []>} : vector<32x8xf32>, vector<8x128xf32>, vector<32x128xf32> -> vector<32x128xf32>
    %4 = vector.broadcast %2 : vector<32x1xf32> to vector<32x128xf32>
    %5 = arith.addf %3, %4 : vector<32x128xf32>
    %6 = math.tanh %5 : vector<32x128xf32>
    %c32 = arith.constant 32 : index
    %c0_4 = arith.constant 0 : index
    %7 = vector.load %arg2[%c32, %c0_4] : memref<72x33xf32, #tpu.memory_space<vmem>>, vector<32x32xf32>
    %c32_5 = arith.constant 32 : index
    %c32_6 = arith.constant 32 : index
    %8 = vector.load %arg2[%c32_5, %c32_6] : memref<72x33xf32, #tpu.memory_space<vmem>>, vector<32x1xf32>
    %cst_7 = arith.constant dense<0.000000e+00> : vector<32x128xf32>
    %9 = tpu.matmul %7, %6, %cst_7 {dimension_numbers = #tpu.dot_dimension_numbers<[1], [0], [0], [1], [0, 0, 1, 1], [], []>} : vector<32x32xf32>, vector<32x128xf32>, vector<32x128xf32> -> vector<32x128xf32>
    %10 = vector.broadcast %8 : vector<32x1xf32> to vector<32x128xf32>
    %11 = arith.addf %9, %10 : vector<32x128xf32>
    %12 = math.tanh %11 : vector<32x128xf32>
    %c64 = arith.constant 64 : index
    %c0_8 = arith.constant 0 : index
    %13 = vector.load %arg2[%c64, %c0_8] : memref<72x33xf32, #tpu.memory_space<vmem>>, vector<8x32xf32>
    %c64_9 = arith.constant 64 : index
    %c32_10 = arith.constant 32 : index
    %14 = vector.load %arg2[%c64_9, %c32_10] : memref<72x33xf32, #tpu.memory_space<vmem>>, vector<8x1xf32>
    %cst_11 = arith.constant dense<0.000000e+00> : vector<8x128xf32>
    %15 = tpu.matmul %13, %12, %cst_11 {dimension_numbers = #tpu.dot_dimension_numbers<[1], [0], [0], [1], [0, 0, 1, 1], [], []>} : vector<8x32xf32>, vector<32x128xf32>, vector<8x128xf32> -> vector<8x128xf32>
    %16 = vector.broadcast %14 : vector<8x1xf32> to vector<8x128xf32>
    %17 = arith.addf %15, %16 : vector<8x128xf32>
    %c0_12 = arith.constant 0 : index
    %c0_13 = arith.constant 0 : index
    %18 = vector.load %arg3[%c0_12, %c0_13] : memref<8x128xf32, #tpu.memory_space<vmem>>, vector<8x128xf32>
    tpu.vector_store %arg3[%c0_12, %c0_13], %17 {strides = array<i32>} : memref<8x128xf32, #tpu.memory_space<vmem>>, vector<8x128xf32>,
    return
  }
  func.func @transform_0(%arg0: i32) -> (i32, i32) {
    %c0_i32 = arith.constant 0 : i32
    %c0_i32_0 = arith.constant 0 : i32
    return %c0_i32, %arg0 : i32, i32
  }
  func.func @transform_1(%arg0: i32) -> (i32, i32) {
    %c0_i32 = arith.constant 0 : i32
    %c0_i32_0 = arith.constant 0 : i32
    %c0_i32_1 = arith.constant 0 : i32
    return %c0_i32, %c0_i32_0 : i32, i32
  }
  func.func @transform_2(%arg0: i32) -> (i32, i32) {
    %c0_i32 = arith.constant 0 : i32
    %c0_i32_0 = arith.constant 0 : i32
    return %c0_i32, %arg0 : i32, i32
  }
}

</mosaic_0001>

<llo_original>
// kernel: pinn_forward.1
$region0: #{pinn_forward.1}
  #allocation0 [shape = 'u32[]', space=smem, size = 0x4, offset = 0x4, fixed_abs, tag = 'smem constant byte address 0x4 - core index']
  #allocation1 [shape = 'u32[72,128]{1,0:T(1,128)}', space=vmem, size = 0x9000, scoped, tag = 'internal scratch']
  %s0 = inlined_call_operand.vmem [shape: f32[8,256], index: 0, kind: input, shape index: {}]
  %s1 = inlined_call_operand.vmem [shape: f32[72,33], index: 1, kind: input, shape index: {}]
  %s2 = inlined_call_operand.vmem [shape: f32[8,256], index: 2, kind: output, shape index: {}]
  %s3 = sld [smem:[#allocation0]]
  $region41: #{pinn_forward.1} parent=0
    _
  %s5 = ssub.s32 1, %s3
  %s6 = scalar_select 0, %s5, %s3
  loop: start=0, step=1, limit=4
  $region2: #{pinn_forward.1} parent=0 // loop_pre_header
    _
  $region3: #{pinn_forward.1} parent=0 // loop_header
    %s8 = sphi 0, %s12
    %p9 = scmp.ge.s32.totalorder %s8, 4
    %s18 = sphi 0, %s20
    %s21 = sphi 0, %s18
    %s22 = sphi 0, %s21
    %s38 = sphi 0, %s22
    %s42 = sphi 0, %s42
    %s44 = sphi 0, %s42
    %s45 = sphi 0, %s44
    %s59 = sphi 0, %s45
    %s65 = sphi 0, %s67
    %s68 = sphi 0, %s65
    %s69 = sphi 0, %s68
    %s85 = sphi 0, %s69
  $region4: #{pinn_forward.1} parent=0 // loop_header_branch
    %11 = sbr.rel (%p9) target = $region8
  $region5: #{pinn_forward.1} parent=0 // loop_body
    %s13 = ssub.s32 %s8, 1
    %s14 = ssub.s32 %s8, 2
    %s15 = sadd.s32 %s8, 1
    %s16 = ssub.s32 %s8, %s15
    %p17 = scmp.eq.s32.totalorder %s16, 0
    %s19 = sadd.s32 %s18, 1
    %s20 = scalar_select %p17, %s18, %s19
    %p23 = pneg %p17
    %p24 = scmp.eq.s32.totalorder %s8, 1
    %p25 = por %p23, %p24
    %p26 = scmp.ne.s32.totalorder %s18, %s21
    %p27 = scmp.eq.s32.totalorder %s8, 0
    %p28 = por %p26, %p27
    %p29 = scmp.ne.s32.totalorder %s18, %s21
    %p30 = scmp.eq.s32.totalorder %s13, 1
    %p31 = por %p29, %p30
    %p32 = scmp.ne.s32.totalorder %s21, %s22
    %p33 = scmp.eq.s32.totalorder %s13, 0
    %p34 = por %p32, %p33
    %p35 = scmp.ne.s32.totalorder %s21, %s22
    %p36 = scmp.eq.s32.totalorder %s14, 1
    %p37 = por %p35, %p36
    %p39 = scmp.ne.s32.totalorder %s22, %s38
    %p40 = scmp.eq.s32.totalorder %s14, 0
    %p41 = por %p39, %p40
    %s43 = sadd.s32 %s42, 1
    %p46 = scmp.eq.s32.totalorder %s8, 1
    %p47 = scmp.ne.s32.totalorder %s42, %s44
    %p48 = scmp.eq.s32.totalorder %s8, 0
    %p49 = por %p47, %p48
    %p50 = scmp.ne.s32.totalorder %s42, %s44
    %p51 = scmp.eq.s32.totalorder %s13, 1
    %p52 = por %p50, %p51
    %p53 = scmp.ne.s32.totalorder %s44, %s45
    %p54 = scmp.eq.s32.totalorder %s13, 0
    %p55 = por %p53, %p54
    %p56 = scmp.ne.s32.totalorder %s44, %s45
    %p57 = scmp.eq.s32.totalorder %s14, 1
    %p58 = por %p56, %p57
    %p60 = scmp.ne.s32.totalorder %s45, %s59
    %p61 = scmp.eq.s32.totalorder %s14, 0
    %p62 = por %p60, %p61
    %s63 = ssub.s32 %s8, %s15
    %p64 = scmp.eq.s32.totalorder %s63, 0
    %s66 = sadd.s32 %s65, 1
    %s67 = scalar_select %p64, %s65, %s66
    %p70 = pneg %p64
    %p71 = scmp.eq.s32.totalorder %s8, 1
    %p72 = por %p70, %p71
    %p73 = scmp.ne.s32.totalorder %s65, %s68
    %p74 = scmp.eq.s32.totalorder %s8, 0
    %p75 = por %p73, %p74
    %p76 = scmp.ne.s32.totalorder %s65, %s68
    %p77 = scmp.eq.s32.totalorder %s13, 1
    %p78 = por %p76, %p77
    %p79 = scmp.ne.s32.totalorder %s68, %s69
    %p80 = scmp.eq.s32.totalorder %s13, 0
    %p81 = por %p79, %p80
    %p82 = scmp.ne.s32.totalorder %s68, %s69
    %p83 = scmp.eq.s32.totalorder %s14, 1
    %p84 = por %p82, %p83
    %p86 = scmp.ne.s32.totalorder %s69, %s85
    %p87 = scmp.eq.s32.totalorder %s14, 0
    %p88 = por %p86, %p87
    %p89 = scmp.le.s32.totalorder 1, %s8
    %p90 = scmp.lt.s32.totalorder %s8, 3
    %p91 = pnand %p89, %p90
    %p92 = pneg %p91
    // Predicated region
    $region9: #{pinn_forward.1} parent=5 // pred_check
      _
    $region10: #{pinn_forward.1} parent=5 // pred_check_branch
      %94 = sbr.rel (%p91) target = $region12
    $region11: #{pinn_forward.1} parent=5 // pred_region
      %s95 = ssub.s32 %s8, 1
      // Predicated region
      $region13: #{pinn_forward.1} parent=11 // pred_check
        %p96 = pneg %p55
      $region14: #{pinn_forward.1} parent=11 // pred_check_branch
        %98 = sbr.rel (%p96) target = $region16
      $region15: #{pinn_forward.1} parent=11 // pred_region
        _
      $region16: #{pinn_forward.1} parent=11 // pred_fallthru
        _
    $region12: #{pinn_forward.1} parent=5 // pred_fallthru
      _
    %p99 = scmp.lt.s32.totalorder %s8, 2
    // Predicated region
    $region17: #{pinn_forward.1} parent=5 // pred_check
      %p100 = pneg %p99
    $region18: #{pinn_forward.1} parent=5 // pred_check_branch
      %102 = sbr.rel (%p100) target = $region20
    $region19: #{pinn_forward.1} parent=5 // pred_region
      // Predicated region
      $region21: #{pinn_forward.1} parent=19 // pred_check
        %p103 = pneg %p28
      $region22: #{pinn_forward.1} parent=19 // pred_check_branch
        %105 = sbr.rel (%p103) target = $region24
      $region23: #{pinn_forward.1} parent=19 // pred_region
        %p106 = scmp.lt.s32.totalorder %s8, 1
        %s107 = scalar_select %p106, %s8, 1
        %s108 = smul.addr %s107, 8
        %s109 = scalar_lea.vmem %s0, %s108
      $region24: #{pinn_forward.1} parent=19 // pred_fallthru
        _
    $region20: #{pinn_forward.1} parent=5 // pred_fallthru
      _
    %p110 = scmp.le.s32.totalorder 1, %s8
    %p111 = scmp.lt.s32.totalorder %s8, 3
    %p112 = pnand %p110, %p111
    %p113 = pneg %p112
    // Predicated region
    $region25: #{pinn_forward.1} parent=5 // pred_check
      _
    $region26: #{pinn_forward.1} parent=5 // pred_check_branch
      %115 = sbr.rel (%p112) target = $region28
    $region27: #{pinn_forward.1} parent=5 // pred_region
      %s116 = ssub.s32 %s8, 1
      %p117 = scmp.lt.s32.totalorder %s13, 1
      %s118 = scalar_select %p117, %s13, 1
      %s119 = smul.addr %s118, 8
      %s120 = scalar_lea.vmem %s0, %s119
      %p121 = pneg %p34
      %p122 = pneg %p31
      %p123 = pneg %p55
      %p124 = pneg %p52
      %p125 = pneg %p81
      %p126 = pneg %p78
      %p127 = scmp.lt.s32.totalorder %s13, 1
      %s128 = scalar_select %p127, %s13, 1
      %s129 = smul.addr %s128, 8
      %s130 = scalar_lea.vmem %s2, %s129
      %p131 = scmp.lt.s32.totalorder %s13, 1
      %s132 = scalar_select %p131, %s13, 1
      %s133 = smul.addr %s132, 8
      %s134 = scalar_lea.vmem %s0, %s133
      %p135 = scmp.lt.s32.totalorder %s13, 1
      %s136 = scalar_select %p135, %s13, 1
      %s137 = smul.addr %s136, 8
      %s138 = scalar_lea.vmem %s2, %s137
      %v139 = vld [vmem:[%s134] sm:$0xff]
      %v140 = vld [vmem:[%s1] sm:$0xff]
      %v141 = vld [vmem:[%s1 + $0x8] sm:$0xff]
      %v142 = vld [vmem:[%s1 + $0x10] sm:$0xff]
      %v143 = vld [vmem:[%s1 + $0x18] sm:$0xff]
      %145 = vset.pattern.permute.xlu0 8
      %146 = vperm.xlu0 %145, %v140
      %v147 = vpop.permute.xlu0 %146
      %150 = vset.pattern.permute.xlu0 8
      %151 = vperm.xlu0 %150, %v141
      %v152 = vpop.permute.xlu0 %151
      %155 = vset.pattern.permute.xlu0 8
      %156 = vperm.xlu0 %155, %v142
      %v157 = vpop.permute.xlu0 %156
      %160 = vset.pattern.permute.xlu0 8
      %161 = vperm.xlu0 %160, %v143
      %v162 = vpop.permute.xlu0 %161
      %vm164 = vcmask 64512
      %v165 = vsel %vm164, %v140, 0
      %v167 = vsel %vm164, %v141, 0
      %v169 = vsel %vm164, %v142, 0
      %v171 = vsel %vm164, %v143, 0
      %173 = vmatpush.msra.mxu0 0.0
      %174 = vmatpush.msra.mxu0 0.0
      %175 = vmatpush.msra.mxu0 0.0
      %176 = vmatpush.msra.mxu0 0.0
      %177 = vmatpush.msra.mxu0 0.0
      %178 = vmatpush.msra.mxu0 0.0
      %179 = vmatpush.msra.mxu0 0.0
      %180 = vmatpush.msra.mxu0 0.0
      %181 = vmatpush.msra.mxu0 0.0
      %182 = vmatpush.msra.mxu0 0.0
      %183 = vmatpush.msra.mxu0 0.0
      %184 = vmatpush.msra.mxu0 0.0
      %185 = vmatpush.msra.mxu0 0.0
      %186 = vmatpush.msra.mxu0 0.0
      %187 = vmatpush.msra.mxu0 0.0
      %188 = vmatpush.msra.mxu0 %v139
      %189 = vmatmul.f32.gmra.mxu0 %v165
      %v190 = vpop.f32.mrf.mxu0
      %v191 = vadd.f32 %v147, %v190
      %192 = vmatmul.f32.gmra.mxu0 %v167
      %v193 = vpop.f32.mrf.mxu0
      %v194 = vadd.f32 %v152, %v193
      %195 = vmatmul.f32.gmra.mxu0 %v169
      %v196 = vpop.f32.mrf.mxu0
      %v197 = vadd.f32 %v157, %v196
      %198 = vmatmul.f32.gmra.mxu0 %v171
      %v199 = vpop.f32.mrf.mxu0
      %v200 = vadd.f32 %v162, %v199
      %201 = vdwg.mxu0
      %v202 = vtanh.pop %v191
      %v203 = vtanh.pop %v194
      %v204 = vtanh.pop %v197
      %v205 = vtanh.pop %v200
      %v206 = vld [vmem:[%s1 + $0x20] sm:$0xff]
      %v207 = vld [vmem:[%s1 + $0x28] sm:$0xff]
      %v208 = vld [vmem:[%s1 + $0x30] sm:$0xff]
      %v209 = vld [vmem:[%s1 + $0x38] sm:$0xff]
      %211 = vset.pattern.permute.xlu0 32
      %212 = vperm.xlu0 %211, %v206
      %v213 = vpop.permute.xlu0 %212
      %216 = vset.pattern.permute.xlu0 32
      %217 = vperm.xlu0 %216, %v207
      %v218 = vpop.permute.xlu0 %217
      %221 = vset.pattern.permute.xlu0 32
      %222 = vperm.xlu0 %221, %v208
      %v223 = vpop.permute.xlu0 %222
      %226 = vset.pattern.permute.xlu0 32
      %227 = vperm.xlu0 %226, %v209
      %v228 = vpop.permute.xlu0 %227
      %vm230 = vcmask 261120
      %v231 = vsel %vm230, %v206, 0
      %v233 = vsel %vm230, %v207, 0
      %v235 = vsel %vm230, %v208, 0
      %v237 = vsel %vm230, %v209, 0
      %239 = vmatpush.msra.mxu0 0.0
      %240 = vmatpush.msra.mxu0 0.0
      %241 = vmatpush.msra.mxu0 0.0
      %242 = vmatpush.msra.mxu0 0.0
      %243 = vmatpush.msra.mxu0 0.0
      %244 = vmatpush.msra.mxu0 0.0
      %245 = vmatpush.msra.mxu0 0.0
      %246 = vmatpush.msra.mxu0 0.0
      %247 = vmatpush.msra.mxu0 0.0
      %248 = vmatpush.msra.mxu0 0.0
      %249 = vmatpush.msra.mxu0 0.0
      %250 = vmatpush.msra.mxu0 0.0
      %251 = vmatpush.msra.mxu0 %v205
      %252 = vmatpush.msra.mxu0 %v204
      %253 = vmatpush.msra.mxu0 %v203
      %254 = vmatpush.msra.mxu0 %v202
      %255 = vmatmul.f32.gmra.mxu0 %v231
      %v256 = vpop.f32.mrf.mxu0
      %v257 = vadd.f32 %v213, %v256
      %258 = vmatmul.f32.gmra.mxu0 %v233
      %v259 = vpop.f32.mrf.mxu0
      %v260 = vadd.f32 %v218, %v259
      %261 = vmatmul.f32.gmra.mxu0 %v235
      %v262 = vpop.f32.mrf.mxu0
      %v263 = vadd.f32 %v223, %v262
      %264 = vmatmul.f32.gmra.mxu0 %v237
      %v265 = vpop.f32.mrf.mxu0
      %v266 = vadd.f32 %v228, %v265
      %267 = vdwg.mxu0
      %v268 = vtanh.pop %v257
      %v269 = vtanh.pop %v260
      %v270 = vtanh.pop %v263
      %v271 = vtanh.pop %v266
      %v272 = vld [vmem:[%s1 + $0x40] sm:$0xff]
      %274 = vset.pattern.permute.xlu0 32
      %275 = vperm.xlu0 %274, %v272
      %v276 = vpop.permute.xlu0 %275
      %v278 = vsel %vm230, %v272, 0
      %280 = vmatpush.msra.mxu0 0.0
      %281 = vmatpush.msra.mxu0 0.0
      %282 = vmatpush.msra.mxu0 0.0
      %283 = vmatpush.msra.mxu0 0.0
      %284 = vmatpush.msra.mxu0 0.0
      %285 = vmatpush.msra.mxu0 0.0
      %286 = vmatpush.msra.mxu0 0.0
      %287 = vmatpush.msra.mxu0 0.0
      %288 = vmatpush.msra.mxu0 0.0
      %289 = vmatpush.msra.mxu0 0.0
      %290 = vmatpush.msra.mxu0 0.0
      %291 = vmatpush.msra.mxu0 0.0
      %292 = vmatpush.msra.mxu0 %v271
      %293 = vmatpush.msra.mxu0 %v270
      %294 = vmatpush.msra.mxu0 %v269
      %295 = vmatpush.msra.mxu0 %v268
      %296 = vmatmul.f32.gmra.mxu0 %v278
      %v297 = vpop.f32.mrf.mxu0
      %v298 = vadd.f32 %v276, %v297
      %299 = vdwg.mxu0
      %300 = vst [vmem:[%s138] sm:$0xff] %v298
      %p301 = scmp.lt.s32.totalorder %s13, 1
      %s302 = scalar_select %p301, %s13, 1
      %s303 = smul.addr %s302, 8
      %s304 = scalar_lea.vmem %s2, %s303
      // Predicated region
      $region29: #{pinn_forward.1} parent=27 // pred_check
        %p305 = pneg %p78
      $region30: #{pinn_forward.1} parent=27 // pred_check_branch
        %307 = sbr.rel (%p305) target = $region32
      $region31: #{pinn_forward.1} parent=27 // pred_region
        _
      $region32: #{pinn_forward.1} parent=27 // pred_fallthru
        _
    $region28: #{pinn_forward.1} parent=5 // pred_fallthru
      _
    %p308 = scmp.le.s32.totalorder 2, %s8
    // Predicated region
    $region33: #{pinn_forward.1} parent=5 // pred_check
      %p309 = pneg %p308
    $region34: #{pinn_forward.1} parent=5 // pred_check_branch
      %311 = sbr.rel (%p309) target = $region36
    $region35: #{pinn_forward.1} parent=5 // pred_region
      %s312 = ssub.s32 %s8, 2
      // Predicated region
      $region37: #{pinn_forward.1} parent=35 // pred_check
        %p313 = pneg %p84
      $region38: #{pinn_forward.1} parent=35 // pred_check_branch
        %315 = sbr.rel (%p313) target = $region40
      $region39: #{pinn_forward.1} parent=35 // pred_region
        %p316 = scmp.lt.s32.totalorder %s14, 1
        %s317 = scalar_select %p316, %s14, 1
        %s318 = smul.addr %s317, 8
        %s319 = scalar_lea.vmem %s2, %s318
      $region40: #{pinn_forward.1} parent=35 // pred_fallthru
        _
    $region36: #{pinn_forward.1} parent=5 // pred_fallthru
      _
  $region6: #{pinn_forward.1} parent=0 // loop_footer
    %s12 = sadd.s32 1, %s8
  $region7: #{pinn_forward.1} parent=0 // loop_footer_branch
    %7 = sbr.rel target = $region3
  $region8: #{pinn_forward.1} parent=0 // loop_exit
    _

</llo_original>
